<compile_context>
chip_gen: v7x
topology: tpu7x:2x2x1
jax: 0.10.0
libtpu: 0.0.40
codegen_flags: <defaults>
</compile_context>

<pallas_src>
import jax
import jax.numpy as jnp
from jax.experimental import pallas as pl
from jax.experimental.pallas import tpu as pltpu


def _coherence_kernel(rd_ref, ra_ref, rev_ref, o_ref):
    # rd_ref: (C, TH, W_rd), ra_ref: (C, TH, W_ra)   (batch/chunk dims squeezed)
    # rev_ref: (TH, TH) anti-identity, VMEM-resident (constant index_map)
    # o_ref : (1, 1)  per-(batch, chunk) partial sum of squared differences
    hi = pl.program_id(2)

    @pl.when(hi == 0)
    def _init():
        o_ref[...] = jnp.zeros_like(o_ref)

    rd = rd_ref[...].astype(jnp.float32)
    ra = ra_ref[...].astype(jnp.float32)

    # Numerically stable softmax over the class axis (axis=0); the divide is an
    # EUP reciprocal + broadcast multiply instead of a VALU divide.
    rd_e = jnp.exp(rd - jnp.max(rd, axis=0, keepdims=True))
    rd_p = rd_e * pl.reciprocal(jnp.sum(rd_e, axis=0, keepdims=True), approx=True)
    ra_e = jnp.exp(ra - jnp.max(ra, axis=0, keepdims=True))
    ra_p = ra_e * pl.reciprocal(jnp.sum(ra_e, axis=0, keepdims=True), approx=True)

    # max over the last (range/angle) axis  ->  (C, TH)
    rd_max = jnp.max(rd_p, axis=-1)
    ra_max = jnp.max(ra_p, axis=-1)

    # torch.rot90(x, 2, [2, 3]) on a (..., H, 1) tensor == flip over H.
    # The rd index_map already picked the mirrored H tile; rows *inside* the
    # tile are reversed by one small matmul with the resident reversal matrix
    # on the otherwise-idle MXU (no per-step iota/compare rebuild).
    rd_flip = jnp.dot(rd_max, rev_ref[...], preferred_element_type=jnp.float32)

    d = rd_flip - ra_max
    o_ref[...] += jnp.sum(d * d, keepdims=True)


def _tpu_vmem_capacity_bytes():
    """Physical VMEM per core; conservative (v7x-sized) fallback if unknown."""
    try:
        return int(pltpu.get_tpu_info().vmem_capacity_bytes)
    except Exception:
        return 64 * 1024 * 1024


def _pick_h_tile(h, c, w_rd, w_ra, itemsize_rd, itemsize_ra, budget_bytes, align):
    """Largest H tile that divides H, satisfies the sublane rule (multiple of
    `align`, or the full H), and keeps the double-buffered input blocks under
    `budget_bytes`. If nothing fits the budget, the smallest aligned divisor is
    used (minimum VMEM) rather than silently falling back to the full extent."""
    per_row = 2 * c * (w_rd * itemsize_rd + w_ra * itemsize_ra)  # 2 pipeline bufs
    if per_row * h <= budget_bytes:
        return h
    divisors = [t for t in range(align, h, align) if h % t == 0]
    fits = [t for t in divisors if per_row * t <= budget_bytes]
    if fits:
        return max(fits)
    if divisors:
        return min(divisors)
    return h  # no aligned divisor at all: full extent is the only legal block


def _pick_num_chunks(num_h, n):
    """Divisor of num_h giving >= ~4 parallel (batch, chunk) units so v7x's two
    TensorCores stay busy even for N==1 / odd N."""
    target = max(1, -(-4 // n))  # ceil(4 / n)
    best = 1
    for d in range(1, num_h + 1):
        if num_h % d == 0 and d <= target:
            best = d
    return best


def coherence_loss_pallas(rd_input, ra_input, global_weight=1.0, h_tile=None):
    """rd_input: (N, C, H, W_rd), ra_input: (N, C, H, W_ra) float logits.
    Returns the scalar weighted coherence loss."""
    n, c, h, w_rd = rd_input.shape
    n2, c2, h2, w_ra = ra_input.shape
    assert (n, c, h) == (n2, c2, h2), "both views must share (N, C, H)"

    itemsize_rd = jnp.dtype(rd_input.dtype).itemsize
    itemsize_ra = jnp.dtype(ra_input.dtype).itemsize
    # bf16/fp8 inputs pack sublanes: align the H tile to 16 instead of 8.
    align = 16 if min(itemsize_rd, itemsize_ra) < 4 else 8

    vmem_cap = _tpu_vmem_capacity_bytes()
    input_budget = vmem_cap // 4            # double-buffered input blocks
    vmem_limit = (vmem_cap * 3) // 4        # 96 MiB on v5e/v6e, 48 MiB on v7x

    if h_tile is None:
        h_tile = _pick_h_tile(h, c, w_rd, w_ra, itemsize_rd, itemsize_ra,
                              input_budget, align)
    assert h % h_tile == 0 and (h_tile % align == 0 or h_tile == h)
    num_h = h // h_tile

    n_chunks = _pick_num_chunks(num_h, n)
    h_inner = num_h // n_chunks

    # Anti-identity used for the intra-tile flip; built once outside the kernel
    # and kept VMEM-resident via its constant index_map.
    rev = jnp.flip(jnp.eye(h_tile, dtype=jnp.float32), axis=1)

    elems = n * c * h * (w_rd + w_ra)
    cost = pl.CostEstimate(
        flops=int(6 * elems + 2 * n * c * h * h_tile),          # softmax/max/mse + flip matmul
        transcendentals=int(elems),                              # one exp per input element
        bytes_accessed=int(rd_input.size * itemsize_rd
                           + ra_input.size * itemsize_ra
                           + n * n_chunks * 4),
    )

    partial = pl.pallas_call(
        _coherence_kernel,
        out_shape=jax.ShapeDtypeStruct((n, n_chunks, 1, 1), jnp.float32),
        grid_spec=pltpu.PrefetchScalarGridSpec(
            num_scalar_prefetch=0,
            grid=(n, n_chunks, h_inner),
            in_specs=[
                # rd view: mirrored H-tile index (part 1 of the 180° rotation)
                pl.BlockSpec(
                    (None, c, h_tile, w_rd),
                    lambda b, ck, hi: (b, 0, num_h - 1 - (ck * h_inner + hi), 0)),
                pl.BlockSpec(
                    (None, c, h_tile, w_ra),
                    lambda b, ck, hi: (b, 0, ck * h_inner + hi, 0)),
                # reversal matrix: constant block index -> DMA'd once, resident
                pl.BlockSpec((h_tile, h_tile), lambda b, ck, hi: (0, 0)),
            ],
            # Output block index is constant across the inner H axis, so the
            # (1,1) block stays resident and serves directly as the accumulator.
            out_specs=pl.BlockSpec((None, None, 1, 1),
                                   lambda b, ck, hi: (b, ck, 0, 0)),
        ),
        compiler_params=pltpu.CompilerParams(
            dimension_semantics=("parallel", "parallel", "arbitrary"),
            vmem_limit_bytes=vmem_limit,
        ),
        cost_estimate=cost,
    )(rd_input, ra_input, rev)

    # MSE mean over N*C*H elements + global weight: tiny reduction, done in JAX
    # so both non-reduction grid axes stay megacore-parallel.
    return (global_weight / float(n * c * h)) * jnp.sum(partial)


def coherence_loss_ref(rd_input, ra_input, global_weight=1.0):
    """Pure-JAX reference mirroring the PyTorch module."""
    rd_sm = jax.nn.softmax(rd_input.astype(jnp.float32), axis=1)
    ra_sm = jax.nn.softmax(ra_input.astype(jnp.float32), axis=1)
    rd_rp = jnp.max(rd_sm, axis=3, keepdims=True)            # (N, C, H, 1)
    rd_rp = jnp.rot90(rd_rp, k=2, axes=(2, 3))                # 180° rotation
    ra_rp = jnp.max(ra_sm, axis=3, keepdims=True)             # (N, C, H, 1)
    return global_weight * jnp.mean((rd_rp - ra_rp) ** 2)


if __name__ == "__main__":
    key = jax.random.PRNGKey(0)
    k1, k2 = jax.random.split(key)

    # Two view masks; widths may differ (they are max-reduced away before the MSE).
    N, C, H, W_RD, W_RA = 2, 4, 32, 16, 32
    rd = jax.random.normal(k1, (N, C, H, W_RD), dtype=jnp.float32)
    ra = jax.random.normal(k2, (N, C, H, W_RA), dtype=jnp.float32)

    # h_tile=8 forces a 4-tile H sweep, so the mirrored-tile rotation, the
    # chunked (parallel) H axis and the init/accumulate path are all exercised
    # even at this toy size: grid = (N=2, n_chunks=2, h_inner=2).
    loss = coherence_loss_pallas(rd, ra, global_weight=1.0, h_tile=8)
    loss = jax.block_until_ready(loss)

    ref = coherence_loss_ref(rd, ra, global_weight=1.0)
    # Tolerance allows for the EUP approximate reciprocal in the in-kernel softmax.
    assert jnp.allclose(loss, ref, atol=1e-4, rtol=1e-3), (loss, ref)

    print("KERNEL_OK")
</pallas_src>

<mosaic_0001>
module attributes {stable_mosaic.version = 11 : i64} {
  func.func @_coherence_kernel(%arg0: i32, %arg1: i32, %arg2: i32, %arg3: memref<1x4x8x16xf32, #tpu.memory_space<vmem>>, %arg4: memref<1x4x8x32xf32, #tpu.memory_space<vmem>>, %arg5: memref<8x8xf32, #tpu.memory_space<vmem>>, %arg6: memref<1x1x1x1xf32, #tpu.memory_space<vmem>>) attributes {dimension_semantics = [#tpu.dimension_semantics<parallel>, #tpu.dimension_semantics<parallel>, #tpu.dimension_semantics<arbitrary>], iteration_bounds = array<i64: 2, 2, 2>, scalar_prefetch = 0 : i64, scratch_operands = 0 : i64, tpu.core_type = #tpu.core_type<tc>, window_params = [{transform_indices = @transform_0, window_bounds = array<i64: 1, 4, 8, 16>}, {transform_indices = @transform_1, window_bounds = array<i64: 1, 4, 8, 32>}, {pipeline_mode = #tpu.pipeline_mode<synchronous>, transform_indices = @transform_2, window_bounds = array<i64: 8, 8>}, {transform_indices = @transform_3, window_bounds = array<i64: 1, 1, 1, 1>}]} {
    %c0_i32 = arith.constant 0 : i32
    %0 = arith.cmpi eq, %arg2, %c0_i32 : i32
    %1 = arith.extui %0 : i1 to i32
    %c0_i32_0 = arith.constant 0 : i32
    %2 = arith.cmpi ne, %1, %c0_i32_0 : i32
    scf.if %2 {
      %cst_25 = arith.constant 0.000000e+00 : f32
      %44 = vector.broadcast %cst_25 : f32 to vector<1x1xf32>
      %c0_26 = arith.constant 0 : index
      %c0_27 = arith.constant 0 : index
      %c0_28 = arith.constant 0 : index
      %c0_29 = arith.constant 0 : index
      %45 = vector.load %arg6[%c0_26, %c0_27, %c0_28, %c0_29] : memref<1x1x1x1xf32, #tpu.memory_space<vmem>>, vector<1x1x1x1xf32>
      %46 = vector.shape_cast %45 : vector<1x1x1x1xf32> to vector<1x1xf32>
      %47 = vector.shape_cast %44 : vector<1x1xf32> to vector<1x1x1x1xf32>
      tpu.vector_store %arg6[%c0_26, %c0_27, %c0_28, %c0_29], %47 {strides = array<i32>} : memref<1x1x1x1xf32, #tpu.memory_space<vmem>>, vector<1x1x1x1xf32>,
    } else {
    }
    %c0 = arith.constant 0 : index
    %c0_1 = arith.constant 0 : index
    %c0_2 = arith.constant 0 : index
    %c0_3 = arith.constant 0 : index
    %3 = vector.load %arg3[%c0, %c0_1, %c0_2, %c0_3] : memref<1x4x8x16xf32, #tpu.memory_space<vmem>>, vector<1x4x8x16xf32>
    %4 = vector.shape_cast %3 : vector<1x4x8x16xf32> to vector<4x8x16xf32>
    %c0_4 = arith.constant 0 : index
    %c0_5 = arith.constant 0 : index
    %c0_6 = arith.constant 0 : index
    %c0_7 = arith.constant 0 : index
    %5 = vector.load %arg4[%c0_4, %c0_5, %c0_6, %c0_7] : memref<1x4x8x32xf32, #tpu.memory_space<vmem>>, vector<1x4x8x32xf32>
    %6 = vector.shape_cast %5 : vector<1x4x8x32xf32> to vector<4x8x32xf32>
    %cst = arith.constant dense<0xFF800000> : vector<8x16xf32>
    %7 = vector.multi_reduction <maximumf>, %4, %cst [0] : vector<4x8x16xf32> to vector<8x16xf32>
    %8 = vector.shape_cast %7 : vector<8x16xf32> to vector<1x8x16xf32>
    %9 = vector.broadcast %8 : vector<1x8x16xf32> to vector<4x8x16xf32>
    %10 = arith.subf %4, %9 : vector<4x8x16xf32>
    %11 = math.exp %10 : vector<4x8x16xf32>
    %cst_8 = arith.constant dense<0.000000e+00> : vector<8x16xf32>
    %12 = vector.multi_reduction <add>, %11, %cst_8 [0] : vector<4x8x16xf32> to vector<8x16xf32>
    %13 = vector.shape_cast %12 : vector<8x16xf32> to vector<1x8x16xf32>
    %14 = tpu.reciprocal %13 {approx = true} : vector<1x8x16xf32> -> vector<1x8x16xf32>
    %15 = vector.broadcast %14 : vector<1x8x16xf32> to vector<4x8x16xf32>
    %16 = arith.mulf %11, %15 : vector<4x8x16xf32>
    %cst_9 = arith.constant dense<0xFF800000> : vector<8x32xf32>
    %17 = vector.multi_reduction <maximumf>, %6, %cst_9 [0] : vector<4x8x32xf32> to vector<8x32xf32>
    %18 = vector.shape_cast %17 : vector<8x32xf32> to vector<1x8x32xf32>
    %19 = vector.broadcast %18 : vector<1x8x32xf32> to vector<4x8x32xf32>
    %20 = arith.subf %6, %19 : vector<4x8x32xf32>
    %21 = math.exp %20 : vector<4x8x32xf32>
    %cst_10 = arith.constant dense<0.000000e+00> : vector<8x32xf32>
    %22 = vector.multi_reduction <add>, %21, %cst_10 [0] : vector<4x8x32xf32> to vector<8x32xf32>
    %23 = vector.shape_cast %22 : vector<8x32xf32> to vector<1x8x32xf32>
    %24 = tpu.reciprocal %23 {approx = true} : vector<1x8x32xf32> -> vector<1x8x32xf32>
    %25 = vector.broadcast %24 : vector<1x8x32xf32> to vector<4x8x32xf32>
    %26 = arith.mulf %21, %25 : vector<4x8x32xf32>
    %cst_11 = arith.constant dense<0xFF800000> : vector<4x8xf32>
    %27 = vector.multi_reduction <maximumf>, %16, %cst_11 [2] : vector<4x8x16xf32> to vector<4x8xf32>
    %cst_12 = arith.constant dense<0xFF800000> : vector<4x8xf32>
    %28 = vector.multi_reduction <maximumf>, %26, %cst_12 [2] : vector<4x8x32xf32> to vector<4x8xf32>
    %c0_13 = arith.constant 0 : index
    %c0_14 = arith.constant 0 : index
    %29 = vector.load %arg5[%c0_13, %c0_14] : memref<8x8xf32, #tpu.memory_space<vmem>>, vector<8x8xf32>
    %cst_15 = arith.constant dense<0.000000e+00> : vector<4x8xf32>
    %30 = tpu.matmul %27, %29, %cst_15 {dimension_numbers = #tpu.dot_dimension_numbers<[1], [0], [0], [1], [0, 0, 1, 1], [], []>} : vector<4x8xf32>, vector<8x8xf32>, vector<4x8xf32> -> vector<4x8xf32>
    %31 = arith.subf %30, %28 : vector<4x8xf32>
    %c0_16 = arith.constant 0 : index
    %c0_17 = arith.constant 0 : index
    %c0_18 = arith.constant 0 : index
    %c0_19 = arith.constant 0 : index
    %32 = vector.load %arg6[%c0_16, %c0_17, %c0_18, %c0_19] : memref<1x1x1x1xf32, #tpu.memory_space<vmem>>, vector<1x1x1x1xf32>
    %33 = vector.shape_cast %32 : vector<1x1x1x1xf32> to vector<1x1xf32>
    %34 = arith.mulf %31, %31 : vector<4x8xf32>
    %35 = vector.shape_cast %34 : vector<4x8xf32> to vector<1x4x8xf32>
    %cst_20 = arith.constant dense<0.000000e+00> : vector<1xf32>
    %36 = vector.multi_reduction <add>, %35, %cst_20 [1, 2] : vector<1x4x8xf32> to vector<1xf32>
    %37 = vector.shape_cast %36 : vector<1xf32> to vector<1x1x1xf32>
    %38 = vector.extract %37[0, 0, 0] : f32 from vector<1x1x1xf32>
    %39 = vector.broadcast %38 : f32 to vector<1x1xf32>
    %40 = arith.addf %33, %39 : vector<1x1xf32>
    %c0_21 = arith.constant 0 : index
    %c0_22 = arith.constant 0 : index
    %c0_23 = arith.constant 0 : index
    %c0_24 = arith.constant 0 : index
    %41 = vector.load %arg6[%c0_21, %c0_22, %c0_23, %c0_24] : memref<1x1x1x1xf32, #tpu.memory_space<vmem>>, vector<1x1x1x1xf32>
    %42 = vector.shape_cast %41 : vector<1x1x1x1xf32> to vector<1x1xf32>
    %43 = vector.shape_cast %40 : vector<1x1xf32> to vector<1x1x1x1xf32>
    tpu.vector_store %arg6[%c0_21, %c0_22, %c0_23, %c0_24], %43 {strides = array<i32>} : memref<1x1x1x1xf32, #tpu.memory_space<vmem>>, vector<1x1x1x1xf32>,
    return
  }
  func.func @transform_0(%arg0: i32, %arg1: i32, %arg2: i32) -> (i32, i32, i32, i32) {
    %c2_i32 = arith.constant 2 : i32
    %0 = arith.muli %arg1, %c2_i32 : i32
    %1 = arith.addi %0, %arg2 : i32
    %c3_i32 = arith.constant 3 : i32
    %2 = arith.subi %c3_i32, %1 : i32
    %c0_i32 = arith.constant 0 : i32
    %c0_i32_0 = arith.constant 0 : i32
    %c0_i32_1 = arith.constant 0 : i32
    return %arg0, %c0_i32, %2, %c0_i32_0 : i32, i32, i32, i32
  }
  func.func @transform_1(%arg0: i32, %arg1: i32, %arg2: i32) -> (i32, i32, i32, i32) {
    %c2_i32 = arith.constant 2 : i32
    %0 = arith.muli %arg1, %c2_i32 : i32
    %1 = arith.addi %0, %arg2 : i32
    %c0_i32 = arith.constant 0 : i32
    %c0_i32_0 = arith.constant 0 : i32
    %c0_i32_1 = arith.constant 0 : i32
    return %arg0, %c0_i32, %1, %c0_i32_0 : i32, i32, i32, i32
  }
  func.func @transform_2(%arg0: i32, %arg1: i32, %arg2: i32) -> (i32, i32) {
    %c0_i32 = arith.constant 0 : i32
    %c0_i32_0 = arith.constant 0 : i32
    %c0_i32_1 = arith.constant 0 : i32
    return %c0_i32, %c0_i32_0 : i32, i32
  }
  func.func @transform_3(%arg0: i32, %arg1: i32, %arg2: i32) -> (i32, i32, i32, i32) {
    %c0_i32 = arith.constant 0 : i32
    %c0_i32_0 = arith.constant 0 : i32
    %c0_i32_1 = arith.constant 0 : i32
    return %arg0, %arg1, %c0_i32, %c0_i32_0 : i32, i32, i32, i32
  }
}

</mosaic_0001>

<llo_original>
// kernel: tpu_custom_call.1
$region0: #{tpu_custom_call.1}
  #allocation0 [shape = 'u32[]', space=smem, size = 0x4, offset = 0x4, fixed_abs, tag = 'smem constant byte address 0x4 - core index']
  #allocation1 [shape = 'u32[144,128]{1,0:T(1,128)}', space=vmem, size = 0x12000, scoped, tag = 'internal scratch']
  %s0 = inlined_call_operand.vmem [shape: f32[2,4,32,16], index: 0, kind: input, shape index: {}]
  %s1 = inlined_call_operand.vmem [shape: f32[2,4,32,32], index: 1, kind: input, shape index: {}]
  %s2 = inlined_call_operand.vmem [shape: f32[8,8], index: 2, kind: input, shape index: {}]
  %s3 = inlined_call_operand.vmem [shape: f32[2,2,1,1], index: 3, kind: output, shape index: {}]
  %s4 = sld [smem:[#allocation0]]
  $region125: #{tpu_custom_call.1} parent=0
    _
  %s6 = ssub.s32 1, %s4
  %s7 = scalar_select 0, %s6, %s4
  $region1: #{tpu_custom_call.1} parent=0
    #allocation2 [shape = 'u8[32768]{0}', space=vmem, size = 0x8000, scoped, tag = 'input window, operand 0']
    #allocation3 [shape = 'u8[32768]{0}', space=vmem, size = 0x8000, scoped, tag = 'input window, operand 1']
    loop: start=0, step=1, limit=10
    $region2: #{tpu_custom_call.1} parent=1 // loop_pre_header
      _
    $region3: #{tpu_custom_call.1} parent=1 // loop_header
      %s9 = sphi 0, %s13
      %p10 = scmp.ge.s32.totalorder %s9, 10
      %s16 = sphi 0, %s35
      %s17 = sphi 0, %s31
      %s18 = sphi 0, %s27
      %s19 = sphi 0, %s16
      %s20 = sphi 0, %s17
      %s21 = sphi 0, %s18
      %s22 = sphi 0, %s19
      %s23 = sphi 0, %s20
      %s24 = sphi 0, %s21
      %s46 = sphi 0, %s48
      %s49 = sphi 0, %s46
      %s50 = sphi 0, %s49
      %s66 = sphi 0, %s50
      %s78 = sphi 0, %s80
      %s81 = sphi 0, %s78
      %s82 = sphi 0, %s81
      %s98 = sphi 0, %s82
      %s102 = sphi 0, %s102
      %s104 = sphi 0, %s102
      %s105 = sphi 0, %s104
      %s119 = sphi 0, %s105
      %s127 = sphi 0, %s129
      %s130 = sphi 0, %s127
      %s131 = sphi 0, %s130
      %s147 = sphi 0, %s131
    $region4: #{tpu_custom_call.1} parent=1 // loop_header_branch
      %12 = sbr.rel (%p10) target = $region8
    $region5: #{tpu_custom_call.1} parent=1 // loop_body
      %s14 = ssub.s32 %s9, 1
      %s15 = ssub.s32 %s9, 2
      %s25 = sadd.s32 1, %s18
      %p26 = scmp.ge.s32.totalorder %s25, 2
      %s27 = scalar_select %p26, 0, %s25
      %s28 = sadd.s32 1, %s17
      %s29 = scalar_select %p26, %s28, %s17
      %p30 = scmp.ge.s32.totalorder %s29, 2
      %s31 = scalar_select %p30, 0, %s29
      %s32 = sadd.s32 1, %s16
      %s33 = scalar_select %p30, %s32, %s16
      %p34 = scmp.ge.s32.totalorder %s33, 2
      %s35 = scalar_select %p34, 0, %s33
      %s36 = smul.u32 %s17, 2
      %s37 = sadd.s32 %s36, %s18
      %s38 = ssub.s32 3, %s37
      %s39 = smul.u32 %s31, 2
      %s40 = sadd.s32 %s39, %s27
      %s41 = ssub.s32 3, %s40
      %s42 = ssub.s32 %s16, %s35
      %s43 = ssub.s32 %s38, %s41
      %s44 = sor.u32 %s42, %s43
      %p45 = scmp.eq.s32.totalorder %s44, 0
      %s47 = sadd.s32 %s46, 1
      %s48 = scalar_select %p45, %s46, %s47
      %p51 = pneg %p45
      %p52 = scmp.eq.s32.totalorder %s9, 7
      %p53 = por %p51, %p52
      %p54 = scmp.ne.s32.totalorder %s46, %s49
      %p55 = scmp.eq.s32.totalorder %s9, 0
      %p56 = por %p54, %p55
      %p57 = scmp.ne.s32.totalorder %s46, %s49
      %p58 = scmp.eq.s32.totalorder %s14, 7
      %p59 = por %p57, %p58
      %p60 = scmp.ne.s32.totalorder %s49, %s50
      %p61 = scmp.eq.s32.totalorder %s14, 0
      %p62 = por %p60, %p61
      %p63 = scmp.ne.s32.totalorder %s49, %s50
      %p64 = scmp.eq.s32.totalorder %s15, 7
      %p65 = por %p63, %p64
      %p67 = scmp.ne.s32.totalorder %s50, %s66
      %p68 = scmp.eq.s32.totalorder %s15, 0
      %p69 = por %p67, %p68
      %s70 = smul.u32 %s17, 2
      %s71 = sadd.s32 %s70, %s18
      %s72 = smul.u32 %s31, 2
      %s73 = sadd.s32 %s72, %s27
      %s74 = ssub.s32 %s16, %s35
      %s75 = ssub.s32 %s71, %s73
      %s76 = sor.u32 %s74, %s75
      %p77 = scmp.eq.s32.totalorder %s76, 0
      %s79 = sadd.s32 %s78, 1
      %s80 = scalar_select %p77, %s78, %s79
      %p83 = pneg %p77
      %p84 = scmp.eq.s32.totalorder %s9, 7
      %p85 = por %p83, %p84
      %p86 = scmp.ne.s32.totalorder %s78, %s81
      %p87 = scmp.eq.s32.totalorder %s9, 0
      %p88 = por %p86, %p87
      %p89 = scmp.ne.s32.totalorder %s78, %s81
      %p90 = scmp.eq.s32.totalorder %s14, 7
      %p91 = por %p89, %p90
      %p92 = scmp.ne.s32.totalorder %s81, %s82
      %p93 = scmp.eq.s32.totalorder %s14, 0
      %p94 = por %p92, %p93
      %p95 = scmp.ne.s32.totalorder %s81, %s82
      %p96 = scmp.eq.s32.totalorder %s15, 7
      %p97 = por %p95, %p96
      %p99 = scmp.ne.s32.totalorder %s82, %s98
      %p100 = scmp.eq.s32.totalorder %s15, 0
      %p101 = por %p99, %p100
      %s103 = sadd.s32 %s102, 1
      %p106 = scmp.eq.s32.totalorder %s9, 7
      %p107 = scmp.ne.s32.totalorder %s102, %s104
      %p108 = scmp.eq.s32.totalorder %s9, 0
      %p109 = por %p107, %p108
      %p110 = scmp.ne.s32.totalorder %s102, %s104
      %p111 = scmp.eq.s32.totalorder %s14, 7
      %p112 = por %p110, %p111
      %p113 = scmp.ne.s32.totalorder %s104, %s105
      %p114 = scmp.eq.s32.totalorder %s14, 0
      %p115 = por %p113, %p114
      %p116 = scmp.ne.s32.totalorder %s104, %s105
      %p117 = scmp.eq.s32.totalorder %s15, 7
      %p118 = por %p116, %p117
      %p120 = scmp.ne.s32.totalorder %s105, %s119
      %p121 = scmp.eq.s32.totalorder %s15, 0
      %p122 = por %p120, %p121
      %s123 = ssub.s32 %s16, %s35
      %s124 = ssub.s32 %s17, %s31
      %s125 = sor.u32 %s123, %s124
      %p126 = scmp.eq.s32.totalorder %s125, 0
      %s128 = sadd.s32 %s127, 1
      %s129 = scalar_select %p126, %s127, %s128
      %p132 = pneg %p126
      %p133 = scmp.eq.s32.totalorder %s9, 7
      %p134 = por %p132, %p133
      %p135 = scmp.ne.s32.totalorder %s127, %s130
      %p136 = scmp.eq.s32.totalorder %s9, 0
      %p137 = por %p135, %p136
      %p138 = scmp.ne.s32.totalorder %s127, %s130
      %p139 = scmp.eq.s32.totalorder %s14, 7
      %p140 = por %p138, %p139
      %p141 = scmp.ne.s32.totalorder %s130, %s131
      %p142 = scmp.eq.s32.totalorder %s14, 0
      %p143 = por %p141, %p142
      %p144 = scmp.ne.s32.totalorder %s130, %s131
      %p145 = scmp.eq.s32.totalorder %s15, 7
      %p146 = por %p144, %p145
      %p148 = scmp.ne.s32.totalorder %s131, %s147
      %p149 = scmp.eq.s32.totalorder %s15, 0
      %p150 = por %p148, %p149
      %p151 = scmp.le.s32.totalorder 1, %s9
      %p152 = scmp.lt.s32.totalorder %s9, 9
      %p153 = pnand %p151, %p152
      %p154 = pneg %p153
      // Predicated region
      $region9: #{tpu_custom_call.1} parent=5 // pred_check
        _
      $region10: #{tpu_custom_call.1} parent=5 // pred_check_branch
        %156 = sbr.rel (%p153) target = $region12
      $region11: #{tpu_custom_call.1} parent=5 // pred_region
        %s157 = ssub.s32 %s9, 1
        // Predicated region
        $region13: #{tpu_custom_call.1} parent=11 // pred_check
          %p158 = pneg %p115
        $region14: #{tpu_custom_call.1} parent=11 // pred_check_branch
          %160 = sbr.rel (%p158) target = $region16
        $region15: #{tpu_custom_call.1} parent=11 // pred_region
          _
        $region16: #{tpu_custom_call.1} parent=11 // pred_fallthru
          _
      $region12: #{tpu_custom_call.1} parent=5 // pred_fallthru
        _
      %p161 = scmp.lt.s32.totalorder %s9, 8
      // Predicated region
      $region17: #{tpu_custom_call.1} parent=5 // pred_check
        %p162 = pneg %p161
      $region18: #{tpu_custom_call.1} parent=5 // pred_check_branch
        %164 = sbr.rel (%p162) target = $region20
      $region19: #{tpu_custom_call.1} parent=5 // pred_region
        // Predicated region
        $region21: #{tpu_custom_call.1} parent=19 // pred_check
          %p165 = pneg %p56
        $region22: #{tpu_custom_call.1} parent=19 // pred_check_branch
          %167 = sbr.rel (%p165) target = $region24
        $region23: #{tpu_custom_call.1} parent=19 // pred_region
          %s168 = sand.u32 %s46, 1
          %s169 = sand.u32 %s46, 1
          %s170 = smul.addr %s169, 32
          %s171 = scalar_lea.vmem [#allocation2], %s170
          %s172 = smul.u32 %s17, 2
          %s173 = sadd.s32 %s172, %s18
          %s174 = ssub.s32 3, %s173
          %s175 = smul.addr %s16, 16
          %s176 = sadd.s32 %s174, %s175
          %s177 = smul.addr %s176, 8
          %s178 = scalar_lea.vmem %s0, %s177
          // Predicated region
          $region25: #{tpu_custom_call.1} parent=23 // pred_check
            _
          $region26: #{tpu_custom_call.1} parent=23 // pred_check_branch
            %180 = sbr.rel (0) target = $region28
          $region27: #{tpu_custom_call.1} parent=23 // pred_region
            // Predicated region
            $region29: #{tpu_custom_call.1} parent=27 // pred_check
              _
            $region30: #{tpu_custom_call.1} parent=27 // pred_check_branch
              %182 = sbr.rel (0) target = $region32
            $region31: #{tpu_custom_call.1} parent=27 // pred_region
              // Predicated region
              $region44: #{tpu_custom_call.1} parent=31 // pred_check
                _
              $region45: #{tpu_custom_call.1} parent=31 // pred_check_branch
                %203 = sbr.rel (0) target = $region47
              $region46: #{tpu_custom_call.1} parent=31 // pred_region
                loop: start=0, step=1, limit=1
                $region48: #{tpu_custom_call.1} parent=46 // loop_pre_header
                  _
                $region49: #{tpu_custom_call.1} parent=46 // loop_header
                  %s205 = sphi 0, %s209
                  %p206 = scmp.ge.s32.totalorder %s205, 1
                  %s210 = sphi %s178, %s178
                  %s211 = sphi %s171, %s171
                $region50: #{tpu_custom_call.1} parent=46 // loop_header_branch
                  %208 = sbr.rel (%p206) target = $region54
                $region51: #{tpu_custom_call.1} parent=46 // loop_body
                  %v212 = vld [vmem:[%s210] sm:$0xff]
                  %213 = vst [vmem:[%s211] sm:$0xff] %v212
                  %v214 = vld [vmem:[%s210 + $0x20] sm:$0xff]
                  %215 = vst [vmem:[%s211 + $0x8] sm:$0xff] %v214
                  %v216 = vld [vmem:[%s210 + $0x40] sm:$0xff]
                  %217 = vst [vmem:[%s211 + $0x10] sm:$0xff] %v216
                  %v218 = vld [vmem:[%s210 + $0x60] sm:$0xff]
                  %219 = vst [vmem:[%s211 + $0x18] sm:$0xff] %v218
                $region52: #{tpu_custom_call.1} parent=46 // loop_footer
                  %s209 = sadd.s32 1, %s205
                $region53: #{tpu_custom_call.1} parent=46 // loop_footer_branch
                  %204 = sbr.rel target = $region49
                $region54: #{tpu_custom_call.1} parent=46 // loop_exit
                  _
              $region47: #{tpu_custom_call.1} parent=31 // pred_fallthru
                _
              // Predicated region
              $region55: #{tpu_custom_call.1} parent=31 // pred_check
                _
              $region56: #{tpu_custom_call.1} parent=31 // pred_check_branch
                %221 = sbr.rel target = $region58
              $region57: #{tpu_custom_call.1} parent=31 // pred_region
                _
              $region58: #{tpu_custom_call.1} parent=31 // pred_fallthru
                _
            $region32: #{tpu_custom_call.1} parent=27 // pred_fallthru
              _
            // Predicated region
            $region33: #{tpu_custom_call.1} parent=27 // pred_check
              _
            $region34: #{tpu_custom_call.1} parent=27 // pred_check_branch
              %184 = sbr.rel target = $region36
            $region35: #{tpu_custom_call.1} parent=27 // pred_region
              loop: start=0, step=1, limit=1
              $region37: #{tpu_custom_call.1} parent=35 // loop_pre_header
                _
              $region38: #{tpu_custom_call.1} parent=35 // loop_header
                %s187 = sphi 0, %s191
                %p188 = scmp.ge.s32.totalorder %s187, 1
                %s192 = sphi %s178, %s178
                %s193 = sphi %s171, %s171
              $region39: #{tpu_custom_call.1} parent=35 // loop_header_branch
                %190 = sbr.rel (%p188) target = $region43
              $region40: #{tpu_custom_call.1} parent=35 // loop_body
                %v194 = vld [vmem:[%s192] sm:$0xff]
                %195 = vst [vmem:[%s193] sm:$0xff] %v194
                %v196 = vld [vmem:[%s192 + $0x20] sm:$0xff]
                %197 = vst [vmem:[%s193 + $0x8] sm:$0xff] %v196
                %v198 = vld [vmem:[%s192 + $0x40] sm:$0xff]
                %199 = vst [vmem:[%s193 + $0x10] sm:$0xff] %v198
                %v200 = vld [vmem:[%s192 + $0x60] sm:$0xff]
                %201 = vst [vmem:[%s193 + $0x18] sm:$0xff] %v200
              $region41: #{tpu_custom_call.1} parent=35 // loop_footer
                %s191 = sadd.s32 1, %s187
              $region42: #{tpu_custom_call.1} parent=35 // loop_footer_branch
                %186 = sbr.rel target = $region38
              $region43: #{tpu_custom_call.1} parent=35 // loop_exit
                _
            $region36: #{tpu_custom_call.1} parent=27 // pred_fallthru
              _
          $region28: #{tpu_custom_call.1} parent=23 // pred_fallthru
            _
          %222 = vnop
        $region24: #{tpu_custom_call.1} parent=19 // pred_fallthru
          _
        // Predicated region
        $region59: #{tpu_custom_call.1} parent=19 // pred_check
          %p223 = pneg %p88
        $region60: #{tpu_custom_call.1} parent=19 // pred_check_branch
          %225 = sbr.rel (%p223) target = $region62
        $region61: #{tpu_custom_call.1} parent=19 // pred_region
          %s226 = sand.u32 %s78, 1
          %s227 = sand.u32 %s78, 1
          %s228 = smul.addr %s227, 32
          %s229 = scalar_lea.vmem [#allocation3], %s228
          %s230 = smul.u32 %s17, 2
          %s231 = sadd.s32 %s230, %s18
          %s232 = smul.addr %s16, 16
          %s233 = sadd.s32 %s231, %s232
          %s234 = smul.addr %s233, 8
          %s235 = scalar_lea.vmem %s1, %s234
          // Predicated region
          $region63: #{tpu_custom_call.1} parent=61 // pred_check
            _
          $region64: #{tpu_custom_call.1} parent=61 // pred_check_branch
            %237 = sbr.rel (0) target = $region66
          $region65: #{tpu_custom_call.1} parent=61 // pred_region
            // Predicated region
            $region67: #{tpu_custom_call.1} parent=65 // pred_check
              _
            $region68: #{tpu_custom_call.1} parent=65 // pred_check_branch
              %239 = sbr.rel (0) target = $region70
            $region69: #{tpu_custom_call.1} parent=65 // pred_region
              // Predicated region
              $region82: #{tpu_custom_call.1} parent=69 // pred_check
                _
              $region83: #{tpu_custom_call.1} parent=69 // pred_check_branch
                %260 = sbr.rel (0) target = $region85
              $region84: #{tpu_custom_call.1} parent=69 // pred_region
                loop: start=0, step=1, limit=1
                $region86: #{tpu_custom_call.1} parent=84 // loop_pre_header
                  _
                $region87: #{tpu_custom_call.1} parent=84 // loop_header
                  %s262 = sphi 0, %s266
                  %p263 = scmp.ge.s32.totalorder %s262, 1
                  %s267 = sphi %s235, %s235
                  %s268 = sphi %s229, %s229
                $region88: #{tpu_custom_call.1} parent=84 // loop_header_branch
                  %265 = sbr.rel (%p263) target = $region92
                $region89: #{tpu_custom_call.1} parent=84 // loop_body
                  %v269 = vld [vmem:[%s267] sm:$0xff]
                  %270 = vst [vmem:[%s268] sm:$0xff] %v269
                  %v271 = vld [vmem:[%s267 + $0x20] sm:$0xff]
                  %272 = vst [vmem:[%s268 + $0x8] sm:$0xff] %v271
                  %v273 = vld [vmem:[%s267 + $0x40] sm:$0xff]
                  %274 = vst [vmem:[%s268 + $0x10] sm:$0xff] %v273
                  %v275 = vld [vmem:[%s267 + $0x60] sm:$0xff]
                  %276 = vst [vmem:[%s268 + $0x18] sm:$0xff] %v275
                $region90: #{tpu_custom_call.1} parent=84 // loop_footer
                  %s266 = sadd.s32 1, %s262
                $region91: #{tpu_custom_call.1} parent=84 // loop_footer_branch
                  %261 = sbr.rel target = $region87
                $region92: #{tpu_custom_call.1} parent=84 // loop_exit
                  _
              $region85: #{tpu_custom_call.1} parent=69 // pred_fallthru
                _
              // Predicated region
              $region93: #{tpu_custom_call.1} parent=69 // pred_check
                _
              $region94: #{tpu_custom_call.1} parent=69 // pred_check_branch
                %278 = sbr.rel target = $region96
              $region95: #{tpu_custom_call.1} parent=69 // pred_region
                _
              $region96: #{tpu_custom_call.1} parent=69 // pred_fallthru
                _
            $region70: #{tpu_custom_call.1} parent=65 // pred_fallthru
              _
            // Predicated region
            $region71: #{tpu_custom_call.1} parent=65 // pred_check
              _
            $region72: #{tpu_custom_call.1} parent=65 // pred_check_branch
              %241 = sbr.rel target = $region74
            $region73: #{tpu_custom_call.1} parent=65 // pred_region
              loop: start=0, step=1, limit=1
              $region75: #{tpu_custom_call.1} parent=73 // loop_pre_header
                _
              $region76: #{tpu_custom_call.1} parent=73 // loop_header
                %s244 = sphi 0, %s248
                %p245 = scmp.ge.s32.totalorder %s244, 1
                %s249 = sphi %s235, %s235
                %s250 = sphi %s229, %s229
              $region77: #{tpu_custom_call.1} parent=73 // loop_header_branch
                %247 = sbr.rel (%p245) target = $region81
              $region78: #{tpu_custom_call.1} parent=73 // loop_body
                %v251 = vld [vmem:[%s249] sm:$0xff]
                %252 = vst [vmem:[%s250] sm:$0xff] %v251
                %v253 = vld [vmem:[%s249 + $0x20] sm:$0xff]
                %254 = vst [vmem:[%s250 + $0x8] sm:$0xff] %v253
                %v255 = vld [vmem:[%s249 + $0x40] sm:$0xff]
                %256 = vst [vmem:[%s250 + $0x10] sm:$0xff] %v255
                %v257 = vld [vmem:[%s249 + $0x60] sm:$0xff]
                %258 = vst [vmem:[%s250 + $0x18] sm:$0xff] %v257
              $region79: #{tpu_custom_call.1} parent=73 // loop_footer
                %s248 = sadd.s32 1, %s244
              $region80: #{tpu_custom_call.1} parent=73 // loop_footer_branch
                %243 = sbr.rel target = $region76
              $region81: #{tpu_custom_call.1} parent=73 // loop_exit
                _
            $region74: #{tpu_custom_call.1} parent=65 // pred_fallthru
              _
          $region66: #{tpu_custom_call.1} parent=61 // pred_fallthru
            _
          %279 = vnop
        $region62: #{tpu_custom_call.1} parent=19 // pred_fallthru
          _
      $region20: #{tpu_custom_call.1} parent=5 // pred_fallthru
        _
      %p280 = scmp.le.s32.totalorder 1, %s9
      %p281 = scmp.lt.s32.totalorder %s9, 9
      %p282 = pnand %p280, %p281
      %p283 = pneg %p282
      // Predicated region
      $region97: #{tpu_custom_call.1} parent=5 // pred_check
        _
      $region98: #{tpu_custom_call.1} parent=5 // pred_check_branch
        %285 = sbr.rel (%p282) target = $region100
      $region99: #{tpu_custom_call.1} parent=5 // pred_region
        %s286 = ssub.s32 %s9, 1
        %s287 = sand.u32 %s49, 1
        %s288 = sand.u32 %s49, 1
        %s289 = smul.addr %s288, 32
        %s290 = scalar_lea.vmem [#allocation2], %s289
        // Predicated region
        $region101: #{tpu_custom_call.1} parent=99 // pred_check
          %p291 = pneg %p62
        $region102: #{tpu_custom_call.1} parent=99 // pred_check_branch
          %293 = sbr.rel (%p291) target = $region104
        $region103: #{tpu_custom_call.1} parent=99 // pred_region
          _
        $region104: #{tpu_custom_call.1} parent=99 // pred_fallthru
          _
        %s294 = sand.u32 %s81, 1
        %s295 = sand.u32 %s81, 1
        %s296 = smul.addr %s295, 32
        %s297 = scalar_lea.vmem [#allocation3], %s296
        // Predicated region
        $region105: #{tpu_custom_call.1} parent=99 // pred_check
          %p298 = pneg %p94
        $region106: #{tpu_custom_call.1} parent=99 // pred_check_branch
          %300 = sbr.rel (%p298) target = $region108
        $region107: #{tpu_custom_call.1} parent=99 // pred_region
          _
        $region108: #{tpu_custom_call.1} parent=99 // pred_fallthru
          _
        %s301 = sand.u32 %s49, 1
        %s302 = sand.u32 %s49, 1
        %s303 = smul.addr %s302, 32
        %s304 = scalar_lea.vmem [#allocation2], %s303
        %p305 = pneg %p62
        %p306 = pneg %p59
        %s307 = sand.u32 %s81, 1
        %s308 = sand.u32 %s81, 1
        %s309 = smul.addr %s308, 32
        %s310 = scalar_lea.vmem [#allocation3], %s309
        %p311 = pneg %p94
        %p312 = pneg %p91
        %p313 = pneg %p115
        %p314 = pneg %p112
        %p315 = pneg %p143
        %p316 = pneg %p140
        %p317 = scmp.lt.s32.totalorder %s19, 1
        %s318 = scalar_select %p317, %s19, 1
        %p319 = scmp.lt.s32.totalorder %s20, 1
        %s320 = scalar_select %p319, %s20, 1
        %s321 = smul.addr %s318, 2
        %s322 = sadd.s32 %s320, %s321
        %s323 = scalar_lea.vmem %s3, %s322
        %s324 = smul.u32 %s20, 2
        %s325 = sadd.s32 %s324, %s21
        %s326 = ssub.s32 3, %s325
        %s327 = smul.u32 %s20, 2
        %s328 = sadd.s32 %s327, %s21
        %p329 = scmp.lt.s32.totalorder %s19, 1
        %s330 = scalar_select %p329, %s19, 1
        %p331 = scmp.lt.s32.totalorder %s20, 1
        %s332 = scalar_select %p331, %s20, 1
        %s333 = smul.addr %s330, 2
        %s334 = sadd.s32 %s332, %s333
        %s335 = scalar_lea.vmem %s3, %s334
        %p336 = scmp.eq.s32.totalorder %s21, 0
        // Predicated region
        $region109: #{tpu_custom_call.1} parent=99 // pred_check
          %p337 = pneg %p336
        $region110: #{tpu_custom_call.1} parent=99 // pred_check_branch
          %339 = sbr.rel (%p337) target = $region112
        $region111: #{tpu_custom_call.1} parent=99 // pred_region
          %vm340 = vcmask 0
          %341 = vst.msk [vmem:[%s335] sm:$0x1] %vm340, 0.0
        $region112: #{tpu_custom_call.1} parent=99 // pred_fallthru
          _
        %v342 = vld [vmem:[%s290] sm:$0xff]
        %v343 = vld [vmem:[%s290 + $0x8] sm:$0xff]
        %v344 = vld [vmem:[%s290 + $0x10] sm:$0xff]
        %v345 = vld [vmem:[%s290 + $0x18] sm:$0xff]
        %v346 = vld [vmem:[%s297] sm:$0xff]
        %v347 = vld [vmem:[%s297 + $0x8] sm:$0xff]
        %v348 = vld [vmem:[%s297 + $0x10] sm:$0xff]
        %v349 = vld [vmem:[%s297 + $0x18] sm:$0xff]
        %vm350 = vcmask 130048
        %v351 = vsel %vm350, %v342, -inf
        %v352 = vsel %vm350, %v343, -inf
        %v353 = vsel %vm350, %v344, -inf
        %v354 = vsel %vm350, %v345, -inf
        %v355 = vmax.f32 %v351, %v352
        %v356 = vmax.f32 %v353, %v354
        %v357 = vmax.f32 %v355, %v356
        %v358 = vsub.f32 %v342, %v357
        %v359 = vsub.f32 %v343, %v357
        %v360 = vsub.f32 %v344, %v357
        %v361 = vsub.f32 %v345, %v357
        %v362 = vmul.f32 %v358, 1.442695
        %v363 = vpow.pop %v362
        %v364 = vmul.f32 %v359, 1.442695
        %v365 = vpow.pop %v364
        %v366 = vmul.f32 %v360, 1.442695
        %v367 = vpow.pop %v366
        %v368 = vmul.f32 %v361, 1.442695
        %v369 = vpow.pop %v368
        %v370 = vsel %vm350, %v363, 0.0
        %v371 = vsel %vm350, %v365, 0.0
        %v372 = vadd.f32 %v370, %v371
        %v373 = vsel %vm350, %v367, 0.0
        %v374 = vadd.f32 %v372, %v373
        %v375 = vsel %vm350, %v369, 0.0
        %v376 = vadd.f32 %v374, %v375
        %v377 = vrcp.pop %v376
        %v378 = vmul.f32 %v363, %v377
        %v379 = vmul.f32 %v365, %v377
        %v380 = vmul.f32 %v367, %v377
        %v381 = vmul.f32 %v369, %v377
        %vm382 = vcmask 261120
        %v383 = vsel %vm382, %v346, -inf
        %v384 = vsel %vm382, %v347, -inf
        %v385 = vsel %vm382, %v348, -inf
        %v386 = vsel %vm382, %v349, -inf
        %v387 = vmax.f32 %v383, %v384
        %v388 = vmax.f32 %v385, %v386
        %v389 = vmax.f32 %v387, %v388
        %v390 = vsub.f32 %v346, %v389
        %v391 = vsub.f32 %v347, %v389
        %v392 = vsub.f32 %v348, %v389
        %v393 = vsub.f32 %v349, %v389
        %v394 = vmul.f32 %v390, 1.442695
        %v395 = vpow.pop %v394
        %v396 = vmul.f32 %v391, 1.442695
        %v397 = vpow.pop %v396
        %v398 = vmul.f32 %v392, 1.442695
        %v399 = vpow.pop %v398
        %v400 = vmul.f32 %v393, 1.442695
        %v401 = vpow.pop %v400
        %v402 = vsel %vm382, %v395, 0.0
        %v403 = vsel %vm382, %v397, 0.0
        %v404 = vadd.f32 %v402, %v403
        %v405 = vsel %vm382, %v399, 0.0
        %v406 = vadd.f32 %v404, %v405
        %v407 = vsel %vm382, %v401, 0.0
        %v408 = vadd.f32 %v406, %v407
        %v409 = vrcp.pop %v408
        %v410 = vmul.f32 %v395, %v409
        %v411 = vmul.f32 %v397, %v409
        %v412 = vmul.f32 %v399, %v409
        %v413 = vmul.f32 %v401, %v409
        %v414 = vsel %vm350, %v378, -inf
        %415 = vmax.xlane.f32.xlu0 %v414
        %v416 = vpop.xlane.xlu0 %415
        %v417 = vsel %vm350, %v379, -inf
        %418 = vmax.xlane.f32.xlu0 %v417
        %v419 = vpop.xlane.xlu0 %418
        %v420 = vsel %vm350, %v380, -inf
        %421 = vmax.xlane.f32.xlu0 %v420
        %v422 = vpop.xlane.xlu0 %421
        %v423 = vsel %vm350, %v381, -inf
        %424 = vmax.xlane.f32.xlu0 %v423
        %v425 = vpop.xlane.xlu0 %424
        %v426 = vsel %vm382, %v410, -inf
        %427 = vmax.xlane.f32.xlu0 %v426
        %v428 = vpop.xlane.xlu0 %427
        %v429 = vsel %vm382, %v411, -inf
        %430 = vmax.xlane.f32.xlu0 %v429
        %v431 = vpop.xlane.xlu0 %430
        %v432 = vsel %vm382, %v412, -inf
        %433 = vmax.xlane.f32.xlu0 %v432
        %v434 = vpop.xlane.xlu0 %433
        %v435 = vsel %vm382, %v413, -inf
        %436 = vmax.xlane.f32.xlu0 %v435
        %v437 = vpop.xlane.xlu0 %436
        %v438 = vld [vmem:[%s2] sm:$0xff]
        %v443 = vlaneseq
        %v444 = vand.u32 %v443, 127
        %v445 = vlaneseq
        %v446 = vshrl.u32 %v445, 7
        %v447 = vsub.s32 %v444, %v446
        %v448 = vrot.slane %v416, %v447
        %v449 = vlaneseq
        %v450 = vshrl.u32 %v449, 7
        %v451 = vsub.s32 %v444, %v450
        %v452 = vrot.slane %v419, %v451
        %v453 = vlaneseq
        %v454 = vshrl.u32 %v453, 7
        %v455 = vsub.s32 %v444, %v454
        %v456 = vrot.slane %v422, %v455
        %v457 = vlaneseq
        %v458 = vshrl.u32 %v457, 7
        %v459 = vsub.s32 %v444, %v458
        %v460 = vrot.slane %v425, %v459
        %vm461 = vcmask 1041409
        %v462 = vsel %vm461, %v452, %v448
        %vm463 = vcmask 1042434
        %v464 = vsel %vm463, %v456, %v462
        %vm465 = vcmask 1043459
        %v466 = vsel %vm465, %v460, %v464
        %vm467 = vcmask 64512
        %v468 = vsel %vm467, %v466, 0
        %470 = vmatprep.subr.mxu0 0.0
        %471 = vmatpush1.msra.mxu0 %v438
        %472 = vmatprep.subr.mxu0 0.0
        %473 = vmatpush1.msra.mxu0 0.0
        %474 = vmatprep.subr.mxu0 0.0
        %475 = vmatpush1.msra.mxu0 0.0
        %476 = vmatprep.subr.mxu0 0.0
        %477 = vmatpush1.msra.mxu0 0.0
        %478 = vmatprep.subr.mxu0 0.0
        %479 = vmatpush1.msra.mxu0 0.0
        %480 = vmatprep.subr.mxu0 0.0
        %481 = vmatpush1.msra.mxu0 0.0
        %482 = vmatprep.subr.mxu0 0.0
        %483 = vmatpush1.msra.mxu0 0.0
        %484 = vmatprep.subr.mxu0 0.0
        %485 = vmatpush1.msra.mxu0 0.0
        %486 = vmatprep.subr.mxu0 0.0
        %487 = vmatpush1.msra.mxu0 0.0
        %488 = vmatprep.subr.mxu0 0.0
        %489 = vmatpush1.msra.mxu0 0.0
        %490 = vmatprep.subr.mxu0 0.0
        %491 = vmatpush1.msra.mxu0 0.0
        %492 = vmatprep.subr.mxu0 0.0
        %493 = vmatpush1.msra.mxu0 0.0
        %494 = vmatprep.subr.mxu0 0.0
        %495 = vmatpush1.msra.mxu0 0.0
        %496 = vmatprep.subr.mxu0 0.0
        %497 = vmatpush1.msra.mxu0 0.0
        %498 = vmatprep.subr.mxu0 0.0
        %499 = vmatpush1.msra.mxu0 0.0
        %500 = vmatprep.subr.mxu0 0.0
        %501 = vmatpush1.msra.mxu0 0.0
        %502 = vmatprep.subr.mxu0 0.0
        %503 = vmatpush1.msra.mxu0 0.0
        %504 = vmatprep.subr.mxu0 0.0
        %505 = vmatpush1.msra.mxu0 0.0
        %506 = vmatprep.subr.mxu0 0.0
        %507 = vmatpush1.msra.mxu0 0.0
        %508 = vmatprep.subr.mxu0 0.0
        %509 = vmatpush1.msra.mxu0 0.0
        %510 = vmatprep.subr.mxu0 0.0
        %511 = vmatpush1.msra.mxu0 0.0
        %512 = vmatprep.subr.mxu0 0.0
        %513 = vmatpush1.msra.mxu0 0.0
        %514 = vmatprep.subr.mxu0 0.0
        %515 = vmatpush1.msra.mxu0 0.0
        %516 = vmatprep.subr.mxu0 0.0
        %517 = vmatpush1.msra.mxu0 0.0
        %518 = vmatprep.subr.mxu0 0.0
        %519 = vmatpush1.msra.mxu0 0.0
        %520 = vmatprep.subr.mxu0 0.0
        %521 = vmatpush1.msra.mxu0 0.0
        %522 = vmatprep.subr.mxu0 0.0
        %523 = vmatpush1.msra.mxu0 0.0
        %524 = vmatprep.subr.mxu0 0.0
        %525 = vmatpush1.msra.mxu0 0.0
        %526 = vmatprep.subr.mxu0 0.0
        %527 = vmatpush1.msra.mxu0 0.0
        %528 = vmatprep.subr.mxu0 0.0
        %529 = vmatpush1.msra.mxu0 0.0
        %530 = vmatprep.subr.mxu0 0.0
        %531 = vmatpush1.msra.mxu0 0.0
        %532 = vmatprep.subr.mxu0 0.0
        %533 = vmatpush1.msra.mxu0 0.0
        %534 = vmatprep.mubr.f32.mxu0 0.0
        %535 = vmatmul.mubr.f32.gmra.mrb[0].mxu0 %v468
        %v536 = vpop.f32.mrb[0].mxu0
        %v537 = vadd.f32 0.0, %v536
        %v538 = vpop.f32.mrb[0].mxu0
        %539 = vdwg.mxu0
        %v544 = vlaneseq
        %v545 = vshrl.u32 %v544, 7
        %v546 = vsub.s32 %v444, %v545
        %v547 = vrot.slane %v428, %v546
        %v548 = vlaneseq
        %v549 = vshrl.u32 %v548, 7
        %v550 = vsub.s32 %v444, %v549
        %v551 = vrot.slane %v431, %v550
        %v552 = vlaneseq
        %v553 = vshrl.u32 %v552, 7
        %v554 = vsub.s32 %v444, %v553
        %v555 = vrot.slane %v434, %v554
        %v556 = vlaneseq
        %v557 = vshrl.u32 %v556, 7
        %v558 = vsub.s32 %v444, %v557
        %v559 = vrot.slane %v437, %v558
        %v560 = vsel %vm461, %v551, %v547
        %v561 = vsel %vm463, %v555, %v560
        %v562 = vsel %vm465, %v559, %v561
        %v564 = vsub.f32 %v537, %v562
        %v565 = vld [vmem:[%s335] sm:$0x1]
        %v566 = vmul.f32 %v564, %v564
        %vm567 = vcmask 60416
        %v568 = vsel %vm567, %v566, 0.0
        %569 = vadd.xlane.f32.xlu0 %v568
        %v570 = vpop.xlane.xlu0 %569
        %v571 = vrot.slane %v570, 4
        %v572 = vadd.f32 %v570, %v571
        %v573 = vrot.slane %v572, 2
        %v574 = vadd.f32 %v572, %v573
        %v575 = vrot.slane %v574, 1
        %v576 = vadd.f32 %v574, %v575
        %s577 = vtos %v576
        %v578 = vstv %s577
        %v579 = vadd.f32 %v565, %v578
        %vm580 = vcmask 0
        %581 = vst.msk [vmem:[%s335] sm:$0x1] %vm580, %v579
        %p582 = scmp.lt.s32.totalorder %s19, 1
        %s583 = scalar_select %p582, %s19, 1
        %p584 = scmp.lt.s32.totalorder %s20, 1
        %s585 = scalar_select %p584, %s20, 1
        %s586 = smul.addr %s583, 2
        %s587 = sadd.s32 %s585, %s586
        %s588 = scalar_lea.vmem %s3, %s587
        // Predicated region
        $region113: #{tpu_custom_call.1} parent=99 // pred_check
          %p589 = pneg %p140
        $region114: #{tpu_custom_call.1} parent=99 // pred_check_branch
          %591 = sbr.rel (%p589) target = $region116
        $region115: #{tpu_custom_call.1} parent=99 // pred_region
          _
        $region116: #{tpu_custom_call.1} parent=99 // pred_fallthru
          _
      $region100: #{tpu_custom_call.1} parent=5 // pred_fallthru
        _
      %p592 = scmp.le.s32.totalorder 2, %s9
      // Predicated region
      $region117: #{tpu_custom_call.1} parent=5 // pred_check
        %p593 = pneg %p592
      $region118: #{tpu_custom_call.1} parent=5 // pred_check_branch
        %595 = sbr.rel (%p593) target = $region120
      $region119: #{tpu_custom_call.1} parent=5 // pred_region
        %s596 = ssub.s32 %s9, 2
        // Predicated region
        $region121: #{tpu_custom_call.1} parent=119 // pred_check
          %p597 = pneg %p146
        $region122: #{tpu_custom_call.1} parent=119 // pred_check_branch
          %599 = sbr.rel (%p597) target = $region124
        $region123: #{tpu_custom_call.1} parent=119 // pred_region
          %p600 = scmp.lt.s32.totalorder %s22, 1
          %s601 = scalar_select %p600, %s22, 1
          %p602 = scmp.lt.s32.totalorder %s23, 1
          %s603 = scalar_select %p602, %s23, 1
          %s604 = smul.addr %s601, 2
          %s605 = sadd.s32 %s603, %s604
          %s606 = scalar_lea.vmem %s3, %s605
        $region124: #{tpu_custom_call.1} parent=119 // pred_fallthru
          _
      $region120: #{tpu_custom_call.1} parent=5 // pred_fallthru
        _
    $region6: #{tpu_custom_call.1} parent=1 // loop_footer
      %s13 = sadd.s32 1, %s9
    $region7: #{tpu_custom_call.1} parent=1 // loop_footer_branch
      %8 = sbr.rel target = $region3
    $region8: #{tpu_custom_call.1} parent=1 // loop_exit
      _

</llo_original>
